<compile_context>
chip_gen: v6e
topology: v6e:2x2x1
jax: 0.10.0
libtpu: 0.0.40
codegen_flags: <defaults>
</compile_context>

<pallas_src>
import jax
import jax.numpy as jnp
from jax.experimental import pallas as pl
from jax.experimental.pallas import tpu as pltpu


# ---------------------------------------------------------------------------
# Kernel: one batch tile through the whole MLP (all weights VMEM-resident).
# ---------------------------------------------------------------------------
def critic_kernel(x_ref, w1_ref, w2_ref, wq_ref, b_ref, q_ref):
    fc1 = w1_ref.shape[1]
    fc2 = w2_ref.shape[1]

    # Static lane slices of the packed bias slab (f32): [b1 | b2 | bq_pad].
    b1 = b_ref[:, :fc1]
    b2 = b_ref[:, fc1:fc1 + fc2]
    bq = b_ref[:, fc1 + fc2:]

    # fc1: x @ W1 + b1 -> relu   (x already holds cat([state, action]) padded to 128)
    h1 = jnp.dot(x_ref[...], w1_ref[...], preferred_element_type=jnp.float32) + b1
    h1 = jnp.maximum(h1, 0.0)

    # fc2: h1 @ W2 + b2 -> relu
    h2 = jnp.dot(h1.astype(w2_ref.dtype), w2_ref[...],
                 preferred_element_type=jnp.float32) + b2
    h2 = jnp.maximum(h2, 0.0)

    # q head (Wq padded to 128 lane-dense output columns; col 0 is the real q).
    # f32 accumulate, bf16 store -> halves the (mostly-zero-padding) writeback.
    q = jnp.dot(h2.astype(wq_ref.dtype), wq_ref[...],
                preferred_element_type=jnp.float32) + bq
    q_ref[...] = q.astype(q_ref.dtype)


# ---------------------------------------------------------------------------
# Wrapper
# ---------------------------------------------------------------------------
def _round_up(n, m):
    return ((n + m - 1) // m) * m


def _cdiv(a, b):
    return -(-a // b)


def critic_forward(state, action, packed_params, block_b=1024):
    """Full critic forward in one pallas_call, tiled over the batch.

    packed_params = (W1_pad bf16 (in_pad, fc1), W2 bf16 (fc1, fc2),
                     Wq_pad bf16 (fc2, 128),   bias f32 (1, fc1+fc2+128))
    """
    w1, w2, wq_pad, bias = packed_params
    in_pad = w1.shape[0]
    fc1 = w1.shape[1]
    fc2 = w2.shape[1]
    qpad = wq_pad.shape[1]

    B = state.shape[0]
    state_dim = state.shape[1]
    action_dim = action.shape[1]
    assert state_dim + action_dim <= in_pad

    # Legalize block_b (bf16 tiles are 16-sublane packed), then balance the
    # tile to the batch: n_steps = cdiv(B, block_b), tb = cdiv(B, n_steps)
    # rounded to 16.  E.g. B=300 -> one 304-row tile, not a 512-row padded one.
    block_b = max(16, _round_up(block_b, 16))
    n_steps = max(1, _cdiv(B, block_b))
    tb = _round_up(_cdiv(B, n_steps), 16)
    b_pad = n_steps * tb

    # Build the lane-dense (b_pad, in_pad) bf16 input directly: state at col 0,
    # action at col state_dim, zeros elsewhere (padded rows/cols are zero).
    x = jnp.zeros((b_pad, in_pad), jnp.bfloat16)
    x = jax.lax.dynamic_update_slice(x, state.astype(jnp.bfloat16), (0, 0))
    x = jax.lax.dynamic_update_slice(x, action.astype(jnp.bfloat16), (0, state_dim))

    grid = (n_steps,)

    cost = pl.CostEstimate(
        flops=2 * b_pad * (in_pad * fc1 + fc1 * fc2 + fc2 * qpad),
        transcendentals=0,
        bytes_accessed=(b_pad * in_pad * 2                      # x (bf16)
                        + (in_pad * fc1 + fc1 * fc2 + fc2 * qpad) * 2  # weights
                        + (fc1 + fc2 + qpad) * 4                # bias slab
                        + b_pad * qpad * 2),                    # output (bf16)
    )

    out = pl.pallas_call(
        critic_kernel,
        out_shape=jax.ShapeDtypeStruct((b_pad, qpad), jnp.bfloat16),
        grid=grid,
        in_specs=[
            pl.BlockSpec((tb, in_pad), lambda i: (i, 0)),           # x tile
            pl.BlockSpec((in_pad, fc1), lambda i: (0, 0)),          # W1 (resident)
            pl.BlockSpec((fc1, fc2), lambda i: (0, 0)),             # W2 (resident)
            pl.BlockSpec((fc2, qpad), lambda i: (0, 0)),            # Wq (resident)
            pl.BlockSpec((1, fc1 + fc2 + qpad), lambda i: (0, 0)),  # bias slab
        ],
        out_specs=pl.BlockSpec((tb, qpad), lambda i: (i, 0)),
        compiler_params=pltpu.CompilerParams(
            dimension_semantics=("parallel",)),
        cost_estimate=cost,
    )(x, w1, w2, wq_pad, bias)

    # Drop batch padding and the 127 zero padding columns of the Q head.
    return out[:B, :1].astype(jnp.float32)


# ---------------------------------------------------------------------------
# Parameter construction (PyTorch-Linear-like uniform init, then packing)
# ---------------------------------------------------------------------------
def init_params(key, state_dim, action_dim, fc1_dims=256, fc2_dims=256):
    """Full-precision params in (in, out) layout:  (w1, b1, w2, b2, wq, bq)."""
    ks = jax.random.split(key, 6)
    in1 = state_dim + action_dim

    def unif(k, shape, fan_in):
        bound = 1.0 / jnp.sqrt(jnp.float32(fan_in))
        return jax.random.uniform(k, shape, jnp.float32, -bound, bound)

    w1 = unif(ks[0], (in1, fc1_dims), in1)
    b1 = unif(ks[1], (1, fc1_dims), in1)
    w2 = unif(ks[2], (fc1_dims, fc2_dims), fc1_dims)
    b2 = unif(ks[3], (1, fc2_dims), fc1_dims)
    wq = unif(ks[4], (fc2_dims, 1), fc2_dims)
    bq = unif(ks[5], (1, 1), fc2_dims)
    return (w1, b1, w2, b2, wq, bq)


def pack_params(w1, b1, w2, b2, wq, bq, q_pad=128, in_pad_to=128):
    """Pack into the 4 kernel arrays: bf16 weights (W1 row-padded to 128,
    Wq column-padded to 128) + one f32 bias slab."""
    in1 = w1.shape[0]
    fc2 = wq.shape[0]
    in_pad = _round_up(max(in1, 1), in_pad_to)

    w1_padded = jnp.zeros((in_pad, w1.shape[1]), jnp.float32).at[:in1, :].set(w1)
    wq_padded = jnp.zeros((fc2, q_pad), jnp.float32).at[:, :1].set(wq)
    bq_padded = jnp.zeros((1, q_pad), jnp.float32).at[:, :1].set(bq)
    bias = jnp.concatenate([b1, b2, bq_padded], axis=1)      # (1, fc1+fc2+128)
    return (w1_padded.astype(jnp.bfloat16),
            w2.astype(jnp.bfloat16),
            wq_padded.astype(jnp.bfloat16),
            bias.astype(jnp.float32))


# ---------------------------------------------------------------------------
# References (for validation)
# ---------------------------------------------------------------------------
def critic_ref_f32(state, action, full_params):
    """Pure-f32 reference of the PyTorch forward."""
    w1, b1, w2, b2, wq, bq = full_params
    x = jnp.concatenate([state, action], axis=1)
    h1 = jnp.maximum(x @ w1 + b1, 0.0)
    h2 = jnp.maximum(h1 @ w2 + b2, 0.0)
    return h2 @ wq + bq


def critic_ref_bf16(state, action, full_params):
    """Reference mirroring the kernel numerics: bf16 operands, f32 accumulation."""
    w1, b1, w2, b2, wq, bq = full_params
    bf = jnp.bfloat16
    x = jnp.concatenate([state, action], axis=1).astype(bf)
    h1 = jnp.dot(x, w1.astype(bf), preferred_element_type=jnp.float32) + b1
    h1 = jnp.maximum(h1, 0.0)
    h2 = jnp.dot(h1.astype(bf), w2.astype(bf), preferred_element_type=jnp.float32) + b2
    h2 = jnp.maximum(h2, 0.0)
    return jnp.dot(h2.astype(bf), wq.astype(bf), preferred_element_type=jnp.float32) + bq


# ---------------------------------------------------------------------------
# TODO(synk): the Adam optimizer / checkpoint save+load / device placement of
# the PyTorch module are training/IO utilities with no Pallas equivalent; only
# forward() is ported.
# ---------------------------------------------------------------------------
if __name__ == "__main__":
    key = jax.random.PRNGKey(0)
    k_s, k_a, k_p, k_s2, k_a2 = jax.random.split(key, 5)

    STATE_DIM, ACTION_DIM = 8, 4

    full_params = init_params(k_p, STATE_DIM, ACTION_DIM)
    packed = pack_params(*full_params)

    # --- small batch: single balanced tile (tb rounded to 16) --------------
    B = 8
    state = jax.random.normal(k_s, (B, STATE_DIM), jnp.float32)
    action = jax.random.normal(k_a, (B, ACTION_DIM), jnp.float32)

    q = jax.block_until_ready(critic_forward(state, action, packed))
    assert q.shape == (B, 1)

    q_bf = critic_ref_bf16(state, action, full_params)
    q_f32 = critic_ref_f32(state, action, full_params)
    assert jnp.allclose(q, q_bf, atol=1e-2, rtol=1e-2), \
        float(jnp.max(jnp.abs(q - q_bf)))
    assert jnp.allclose(q, q_f32, atol=5e-2, rtol=5e-2), \
        float(jnp.max(jnp.abs(q - q_f32)))

    # --- awkward batch, default block_b: one balanced 304-row tile ---------
    B2 = 300
    state2 = jax.random.normal(k_s2, (B2, STATE_DIM), jnp.float32)
    action2 = jax.random.normal(k_a2, (B2, ACTION_DIM), jnp.float32)

    q2 = jax.block_until_ready(critic_forward(state2, action2, packed))
    assert q2.shape == (B2, 1)
    q2_bf = critic_ref_bf16(state2, action2, full_params)
    assert jnp.allclose(q2, q2_bf, atol=1e-2, rtol=1e-2), \
        float(jnp.max(jnp.abs(q2 - q2_bf)))

    # --- same batch, small block_b: exercises a multi-step grid ------------
    # (block_b=100 is legalized to 112; 300 -> 3 steps of 112 rows.)
    q3 = jax.block_until_ready(critic_forward(state2, action2, packed, block_b=100))
    assert q3.shape == (B2, 1)
    assert jnp.allclose(q3, q2_bf, atol=1e-2, rtol=1e-2), \
        float(jnp.max(jnp.abs(q3 - q2_bf)))

    print("KERNEL_OK")
</pallas_src>

<mosaic_0001>
module attributes {stable_mosaic.version = 11 : i64} {
  func.func @critic_kernel(%arg0: i32, %arg1: memref<16x128xbf16, #tpu.memory_space<vmem>>, %arg2: memref<128x256xbf16, #tpu.memory_space<vmem>>, %arg3: memref<256x256xbf16, #tpu.memory_space<vmem>>, %arg4: memref<256x128xbf16, #tpu.memory_space<vmem>>, %arg5: memref<1x640xf32, #tpu.memory_space<vmem>>, %arg6: memref<16x128xbf16, #tpu.memory_space<vmem>>) attributes {dimension_semantics = [#tpu.dimension_semantics<parallel>], iteration_bounds = array<i64: 1>, scalar_prefetch = 0 : i64, scratch_operands = 0 : i64, tpu.core_type = #tpu.core_type<tc>, window_params = [{transform_indices = @transform_0, window_bounds = array<i64: 16, 128>}, {pipeline_mode = #tpu.pipeline_mode<synchronous>, transform_indices = @transform_1, window_bounds = array<i64: 128, 256>}, {pipeline_mode = #tpu.pipeline_mode<synchronous>, transform_indices = @transform_2, window_bounds = array<i64: 256, 256>}, {pipeline_mode = #tpu.pipeline_mode<synchronous>, transform_indices = @transform_3, window_bounds = array<i64: 256, 128>}, {pipeline_mode = #tpu.pipeline_mode<synchronous>, transform_indices = @transform_4, window_bounds = array<i64: 1, 640>}, {transform_indices = @transform_5, window_bounds = array<i64: 16, 128>}]} {
    %c0 = arith.constant 0 : index
    %c0_0 = arith.constant 0 : index
    %0 = vector.load %arg5[%c0, %c0_0] : memref<1x640xf32, #tpu.memory_space<vmem>>, vector<1x256xf32>
    %c0_1 = arith.constant 0 : index
    %c256 = arith.constant 256 : index
    %1 = vector.load %arg5[%c0_1, %c256] : memref<1x640xf32, #tpu.memory_space<vmem>>, vector<1x256xf32>
    %c0_2 = arith.constant 0 : index
    %c512 = arith.constant 512 : index
    %2 = vector.load %arg5[%c0_2, %c512] : memref<1x640xf32, #tpu.memory_space<vmem>>, vector<1x128xf32>
    %c0_3 = arith.constant 0 : index
    %c0_4 = arith.constant 0 : index
    %3 = vector.load %arg1[%c0_3, %c0_4] : memref<16x128xbf16, #tpu.memory_space<vmem>>, vector<16x128xbf16>
    %c0_5 = arith.constant 0 : index
    %c0_6 = arith.constant 0 : index
    %4 = vector.load %arg2[%c0_5, %c0_6] : memref<128x256xbf16, #tpu.memory_space<vmem>>, vector<128x256xbf16>
    %cst = arith.constant dense<0.000000e+00> : vector<16x256xf32>
    %5 = tpu.matmul %3, %4, %cst {dimension_numbers = #tpu.dot_dimension_numbers<[1], [0], [0], [1], [0, 0, 1, 1], [], []>} : vector<16x128xbf16>, vector<128x256xbf16>, vector<16x256xf32> -> vector<16x256xf32>
    %6 = vector.broadcast %0 : vector<1x256xf32> to vector<16x256xf32>
    %7 = arith.addf %5, %6 : vector<16x256xf32>
    %cst_7 = arith.constant 0.000000e+00 : f32
    %8 = vector.broadcast %cst_7 : f32 to vector<16x256xf32>
    %9 = arith.maximumf %7, %8 : vector<16x256xf32>
    %10 = arith.truncf %9 : vector<16x256xf32> to vector<16x256xbf16>
    %c0_8 = arith.constant 0 : index
    %c0_9 = arith.constant 0 : index
    %11 = vector.load %arg3[%c0_8, %c0_9] : memref<256x256xbf16, #tpu.memory_space<vmem>>, vector<256x256xbf16>
    %cst_10 = arith.constant dense<0.000000e+00> : vector<16x256xf32>
    %12 = tpu.matmul %10, %11, %cst_10 {dimension_numbers = #tpu.dot_dimension_numbers<[1], [0], [0], [1], [0, 0, 1, 1], [], []>} : vector<16x256xbf16>, vector<256x256xbf16>, vector<16x256xf32> -> vector<16x256xf32>
    %13 = vector.broadcast %1 : vector<1x256xf32> to vector<16x256xf32>
    %14 = arith.addf %12, %13 : vector<16x256xf32>
    %cst_11 = arith.constant 0.000000e+00 : f32
    %15 = vector.broadcast %cst_11 : f32 to vector<16x256xf32>
    %16 = arith.maximumf %14, %15 : vector<16x256xf32>
    %17 = arith.truncf %16 : vector<16x256xf32> to vector<16x256xbf16>
    %c0_12 = arith.constant 0 : index
    %c0_13 = arith.constant 0 : index
    %18 = vector.load %arg4[%c0_12, %c0_13] : memref<256x128xbf16, #tpu.memory_space<vmem>>, vector<256x128xbf16>
    %cst_14 = arith.constant dense<0.000000e+00> : vector<16x128xf32>
    %19 = tpu.matmul %17, %18, %cst_14 {dimension_numbers = #tpu.dot_dimension_numbers<[1], [0], [0], [1], [0, 0, 1, 1], [], []>} : vector<16x256xbf16>, vector<256x128xbf16>, vector<16x128xf32> -> vector<16x128xf32>
    %20 = vector.broadcast %2 : vector<1x128xf32> to vector<16x128xf32>
    %21 = arith.addf %19, %20 : vector<16x128xf32>
    %22 = arith.truncf %21 : vector<16x128xf32> to vector<16x128xbf16>
    %c0_15 = arith.constant 0 : index
    %c0_16 = arith.constant 0 : index
    %23 = vector.load %arg6[%c0_15, %c0_16] : memref<16x128xbf16, #tpu.memory_space<vmem>>, vector<16x128xbf16>
    tpu.vector_store %arg6[%c0_15, %c0_16], %22 {strides = array<i32>} : memref<16x128xbf16, #tpu.memory_space<vmem>>, vector<16x128xbf16>,
    return
  }
  func.func @transform_0(%arg0: i32) -> (i32, i32) {
    %c0_i32 = arith.constant 0 : i32
    %c0_i32_0 = arith.constant 0 : i32
    return %arg0, %c0_i32 : i32, i32
  }
  func.func @transform_1(%arg0: i32) -> (i32, i32) {
    %c0_i32 = arith.constant 0 : i32
    %c0_i32_0 = arith.constant 0 : i32
    %c0_i32_1 = arith.constant 0 : i32
    return %c0_i32, %c0_i32_0 : i32, i32
  }
  func.func @transform_2(%arg0: i32) -> (i32, i32) {
    %c0_i32 = arith.constant 0 : i32
    %c0_i32_0 = arith.constant 0 : i32
    %c0_i32_1 = arith.constant 0 : i32
    return %c0_i32, %c0_i32_0 : i32, i32
  }
  func.func @transform_3(%arg0: i32) -> (i32, i32) {
    %c0_i32 = arith.constant 0 : i32
    %c0_i32_0 = arith.constant 0 : i32
    %c0_i32_1 = arith.constant 0 : i32
    return %c0_i32, %c0_i32_0 : i32, i32
  }
  func.func @transform_4(%arg0: i32) -> (i32, i32) {
    %c0_i32 = arith.constant 0 : i32
    %c0_i32_0 = arith.constant 0 : i32
    %c0_i32_1 = arith.constant 0 : i32
    return %c0_i32, %c0_i32_0 : i32, i32
  }
  func.func @transform_5(%arg0: i32) -> (i32, i32) {
    %c0_i32 = arith.constant 0 : i32
    %c0_i32_0 = arith.constant 0 : i32
    return %arg0, %c0_i32 : i32, i32
  }
}

</mosaic_0001>

<llo_original>
// kernel: tpu_custom_call.1
$region0: #{tpu_custom_call.1}
  #allocation0 [shape = 'u32[]', space=smem, size = 0x4, offset = 0x4, fixed_abs, tag = 'smem constant byte address 0x4 - core index']
  #allocation1 [shape = 'u32[144,128]{1,0:T(1,128)}', space=vmem, size = 0x12000, scoped, tag = 'internal scratch']
  %s0 = inlined_call_operand.hbm [shape: bf16[16,128], index: 0, kind: input, shape index: {}]
  %s1 = inlined_call_operand.hbm [shape: bf16[128,256], index: 1, kind: input, shape index: {}]
  %s2 = inlined_call_operand.hbm [shape: bf16[256,256], index: 2, kind: input, shape index: {}]
  %s3 = inlined_call_operand.hbm [shape: bf16[256,128], index: 3, kind: input, shape index: {}]
  %s4 = inlined_call_operand.vmem [shape: f32[1,640], index: 4, kind: input, shape index: {}]
  %s5 = inlined_call_operand.hbm [shape: bf16[16,128], index: 5, kind: output, shape index: {}]
  %s6 = sld [smem:[#allocation0]]
  $region46: #{tpu_custom_call.1} parent=0
    _
  %s8 = ssub.s32 1, %s6
  %s9 = scalar_select 0, %s8, %s6
  $region1: #{tpu_custom_call.1} parent=0
    #allocation2 [shape = 'u8[4096]{0}', space=vmem, size = 0x1000, scoped, tag = 'input window, operand 0, single buffered']
    #allocation3 [shape = 's32[1]{0}', space=sflag, size = 0x4, scoped, tag = 'scoped memory for tpu_custom_call.1']
    #allocation4 [shape = 's32[1]{0}', space=sflag, size = 0x4, scoped, tag = 'scoped memory for tpu_custom_call.1']
    #allocation5 [shape = 'u8[65536]{0}', space=vmem, size = 0x10000, scoped, tag = 'input window, operand 1, single buffered']
    #allocation6 [shape = 's32[1]{0}', space=sflag, size = 0x4, scoped, tag = 'scoped memory for tpu_custom_call.1']
    #allocation7 [shape = 'u8[131072]{0}', space=vmem, size = 0x20000, scoped, tag = 'input window, operand 2, single buffered']
    #allocation8 [shape = 'u8[65536]{0}', space=vmem, size = 0x10000, scoped, tag = 'input window, operand 3, single buffered']
    #allocation9 [shape = 's32[1]{0}', space=sflag, size = 0x4, scoped, tag = 'scoped memory for tpu_custom_call.1']
    #allocation10 [shape = 'u8[4096]{0}', space=vmem, size = 0x1000, scoped, tag = 'output window, operand 0, single buffered']
    %10 = vsyncpa [#allocation3], 0
    %11 = vsyncpa [#allocation6], 0
    %12 = vsyncpa [#allocation9], 0
    %13 = vsyncpa [#allocation4], 0
    // Predicated region
    $region2: #{tpu_custom_call.1} parent=1 // pred_check
      _
    $region3: #{tpu_custom_call.1} parent=1 // pred_check_branch
      %15 = sbr.rel (0) target = $region5
    $region4: #{tpu_custom_call.1} parent=1 // pred_region
      %s17 = ssub.s32 128, 128
      %18 = vsyncadd [#allocation3], %s17
      %s19 = sshll.u32 [#allocation2], 4
      %s20 = int_to_ptr.vmem [resolvable:$true] %s19
      %25 = dma.hbm_to_vmem [thread:$0]  %s0, 128, %s20, [#allocation3], 64, 64, 4
    $region5: #{tpu_custom_call.1} parent=1 // pred_fallthru
      _
    // Predicated region
    $region6: #{tpu_custom_call.1} parent=1 // pred_check
      _
    $region7: #{tpu_custom_call.1} parent=1 // pred_check_branch
      %27 = sbr.rel (0) target = $region9
    $region8: #{tpu_custom_call.1} parent=1 // pred_region
      %s29 = ssub.s32 2048, 2048
      %30 = vsyncadd [#allocation6], %s29
      %s31 = sshll.u32 [#allocation5], 4
      %s32 = int_to_ptr.vmem [resolvable:$true] %s31
      %37 = dma.hbm_to_vmem [thread:$0]  %s1, 2048, %s32, [#allocation6], 128, 128, 8
    $region9: #{tpu_custom_call.1} parent=1 // pred_fallthru
      _
    // Predicated region
    $region10: #{tpu_custom_call.1} parent=1 // pred_check
      _
    $region11: #{tpu_custom_call.1} parent=1 // pred_check_branch
      %39 = sbr.rel (0) target = $region13
    $region12: #{tpu_custom_call.1} parent=1 // pred_region
      %s41 = ssub.s32 4096, 4096
      %42 = vsyncadd [#allocation6], %s41
      %s43 = sshll.u32 [#allocation7], 4
      %s44 = int_to_ptr.vmem [resolvable:$true] %s43
      %49 = dma.hbm_to_vmem [thread:$0]  %s2, 4096, %s44, [#allocation6], 128, 128, 8
    $region13: #{tpu_custom_call.1} parent=1 // pred_fallthru
      _
    // Predicated region
    $region14: #{tpu_custom_call.1} parent=1 // pred_check
      _
    $region15: #{tpu_custom_call.1} parent=1 // pred_check_branch
      %51 = sbr.rel (0) target = $region17
    $region16: #{tpu_custom_call.1} parent=1 // pred_region
      %s53 = ssub.s32 2048, 2048
      %54 = vsyncadd [#allocation9], %s53
      %s55 = sshll.u32 [#allocation8], 4
      %s56 = int_to_ptr.vmem [resolvable:$true] %s55
      %61 = dma.hbm_to_vmem [thread:$0]  %s3, 2048, %s56, [#allocation9], 64, 64, 4
    $region17: #{tpu_custom_call.1} parent=1 // pred_fallthru
      _
    // Predicated region
    $region18: #{tpu_custom_call.1} parent=1 // pred_check
      _
    $region19: #{tpu_custom_call.1} parent=1 // pred_check_branch
      %63 = sbr.rel (0) target = $region21
    $region20: #{tpu_custom_call.1} parent=1 // pred_region
      _
    $region21: #{tpu_custom_call.1} parent=1 // pred_fallthru
      _
    // Predicated region
    $region22: #{tpu_custom_call.1} parent=1 // pred_check
      _
    $region23: #{tpu_custom_call.1} parent=1 // pred_check_branch
      %65 = sbr.rel (0) target = $region25
    $region24: #{tpu_custom_call.1} parent=1 // pred_region
      %66 = dma.done [#allocation3], 128
    $region25: #{tpu_custom_call.1} parent=1 // pred_fallthru
      _
    // Predicated region
    $region26: #{tpu_custom_call.1} parent=1 // pred_check
      _
    $region27: #{tpu_custom_call.1} parent=1 // pred_check_branch
      %68 = sbr.rel (0) target = $region29
    $region28: #{tpu_custom_call.1} parent=1 // pred_region
      %69 = dma.done [#allocation6], 2048
    $region29: #{tpu_custom_call.1} parent=1 // pred_fallthru
      _
    // Predicated region
    $region30: #{tpu_custom_call.1} parent=1 // pred_check
      _
    $region31: #{tpu_custom_call.1} parent=1 // pred_check_branch
      %71 = sbr.rel (0) target = $region33
    $region32: #{tpu_custom_call.1} parent=1 // pred_region
      %72 = dma.done [#allocation6], 4096
    $region33: #{tpu_custom_call.1} parent=1 // pred_fallthru
      _
    // Predicated region
    $region34: #{tpu_custom_call.1} parent=1 // pred_check
      _
    $region35: #{tpu_custom_call.1} parent=1 // pred_check_branch
      %74 = sbr.rel (0) target = $region37
    $region36: #{tpu_custom_call.1} parent=1 // pred_region
      %75 = dma.done [#allocation9], 2048
    $region37: #{tpu_custom_call.1} parent=1 // pred_fallthru
      _
    %v77 = vld [vmem:[%s4] sm:$0x3]
    %v78 = vld [vmem:[%s4 + $0x2] sm:$0x3]
    %v79 = vld [vmem:[%s4 + $0x4] sm:$0x1]
    %v80 = vld [vmem:[#allocation2] sm:$0xf]
    %v81 = vld [vmem:[#allocation2 + $0x4] sm:$0xf]
    %v82 = vld [vmem:[#allocation5] sm:$0xff]
    %v83 = vld [vmem:[#allocation5 + $0x8] sm:$0xff]
    %v84 = vld [vmem:[#allocation5 + $0x10] sm:$0xff]
    %v85 = vld [vmem:[#allocation5 + $0x18] sm:$0xff]
    %v86 = vld [vmem:[#allocation5 + $0x20] sm:$0xff]
    %v87 = vld [vmem:[#allocation5 + $0x28] sm:$0xff]
    %v88 = vld [vmem:[#allocation5 + $0x30] sm:$0xff]
    %v89 = vld [vmem:[#allocation5 + $0x38] sm:$0xff]
    %v90 = vld [vmem:[#allocation5 + $0x40] sm:$0xff]
    %v91 = vld [vmem:[#allocation5 + $0x48] sm:$0xff]
    %v92 = vld [vmem:[#allocation5 + $0x50] sm:$0xff]
    %v93 = vld [vmem:[#allocation5 + $0x58] sm:$0xff]
    %v94 = vld [vmem:[#allocation5 + $0x60] sm:$0xff]
    %v95 = vld [vmem:[#allocation5 + $0x68] sm:$0xff]
    %v96 = vld [vmem:[#allocation5 + $0x70] sm:$0xff]
    %v97 = vld [vmem:[#allocation5 + $0x78] sm:$0xff]
    %v99 = vlaneseq
    %v100 = vshrl.u32 %v99, 7
    %v101 = vsub.s32 0, %v100
    %v102 = vrot.slane %v77, %v101
    %v103 = vlaneseq
    %v104 = vshrl.u32 %v103, 7
    %v105 = vsub.s32 1, %v104
    %v106 = vrot.slane %v77, %v105
    %v111 = vunpack.c.l.b16 %v80
    %v112 = vunpack.c.l.b16 %v81
    %v113 = vpack.c.b16 %v112, %v111
    %v131 = vunpack.c.l.b16 %v82
    %v132 = vunpack.c.h.b16 %v82
    %v133 = vunpack.c.l.b16 %v83
    %v134 = vunpack.c.h.b16 %v83
    %v135 = vunpack.c.l.b16 %v84
    %v136 = vunpack.c.h.b16 %v84
    %v137 = vunpack.c.l.b16 %v85
    %v138 = vunpack.c.h.b16 %v85
    %v139 = vunpack.c.l.b16 %v86
    %v140 = vunpack.c.h.b16 %v86
    %v141 = vunpack.c.l.b16 %v87
    %v142 = vunpack.c.h.b16 %v87
    %v143 = vunpack.c.l.b16 %v88
    %v144 = vunpack.c.h.b16 %v88
    %v145 = vunpack.c.l.b16 %v89
    %v146 = vunpack.c.h.b16 %v89
    %v147 = vunpack.c.l.b16 %v90
    %v148 = vunpack.c.h.b16 %v90
    %v149 = vunpack.c.l.b16 %v91
    %v150 = vunpack.c.h.b16 %v91
    %v151 = vunpack.c.l.b16 %v92
    %v152 = vunpack.c.h.b16 %v92
    %v153 = vunpack.c.l.b16 %v93
    %v154 = vunpack.c.h.b16 %v93
    %v155 = vunpack.c.l.b16 %v94
    %v156 = vunpack.c.h.b16 %v94
    %v157 = vunpack.c.l.b16 %v95
    %v158 = vunpack.c.h.b16 %v95
    %v159 = vunpack.c.l.b16 %v96
    %v160 = vunpack.c.h.b16 %v96
    %v161 = vunpack.c.l.b16 %v97
    %v162 = vunpack.c.h.b16 %v97
    %v163 = vpack.c.b16 %v133, %v131
    %v164 = vpack.c.b16 %v134, %v132
    %v165 = vpack.c.b16 %v137, %v135
    %v166 = vpack.c.b16 %v138, %v136
    %v167 = vpack.c.b16 %v141, %v139
    %v168 = vpack.c.b16 %v142, %v140
    %v169 = vpack.c.b16 %v145, %v143
    %v170 = vpack.c.b16 %v146, %v144
    %v171 = vpack.c.b16 %v149, %v147
    %v172 = vpack.c.b16 %v150, %v148
    %v173 = vpack.c.b16 %v153, %v151
    %v174 = vpack.c.b16 %v154, %v152
    %v175 = vpack.c.b16 %v157, %v155
    %v176 = vpack.c.b16 %v158, %v156
    %v177 = vpack.c.b16 %v161, %v159
    %v178 = vpack.c.b16 %v162, %v160
    %195 = vmatprep.subr.bf16.mxu0 %v178
    %196 = vmatpush1.bf16.msra.mxu0 %v177
    %197 = vmatprep.subr.bf16.mxu0 %v176
    %198 = vmatpush1.bf16.msra.mxu0 %v175
    %199 = vmatprep.subr.bf16.mxu0 %v174
    %200 = vmatpush1.bf16.msra.mxu0 %v173
    %201 = vmatprep.subr.bf16.mxu0 %v172
    %202 = vmatpush1.bf16.msra.mxu0 %v171
    %203 = vmatprep.subr.bf16.mxu0 %v170
    %204 = vmatpush1.bf16.msra.mxu0 %v169
    %205 = vmatprep.subr.bf16.mxu0 %v168
    %206 = vmatpush1.bf16.msra.mxu0 %v167
    %207 = vmatprep.subr.bf16.mxu0 %v166
    %208 = vmatpush1.bf16.msra.mxu0 %v165
    %209 = vmatprep.subr.bf16.mxu0 %v164
    %210 = vmatpush1.bf16.msra.mxu0 %v163
    %211 = vmatprep.subr.bf16.mxu0 0
    %212 = vmatpush2.bf16.msra.mxu0 0
    %213 = vmatprep.subr.bf16.mxu0 0
    %214 = vmatpush2.bf16.msra.mxu0 0
    %215 = vmatprep.subr.bf16.mxu0 0
    %216 = vmatpush2.bf16.msra.mxu0 0
    %217 = vmatprep.subr.bf16.mxu0 0
    %218 = vmatpush2.bf16.msra.mxu0 0
    %219 = vmatprep.subr.bf16.mxu0 0
    %220 = vmatpush2.bf16.msra.mxu0 0
    %221 = vmatprep.subr.bf16.mxu0 0
    %222 = vmatpush2.bf16.msra.mxu0 0
    %223 = vmatprep.subr.bf16.mxu0 0
    %224 = vmatpush2.bf16.msra.mxu0 0
    %225 = vmatprep.subr.bf16.mxu0 0
    %226 = vmatpush2.bf16.msra.mxu0 0
    %227 = vmatprep.mubr.bf16.mxu0 0
    %228 = vmatmul.mubr.bf16.gmra.mxu0 %v113
    %v229 = vpop.f32.mrf.mxu0
    %v230 = vadd.f32 %v102, %v229
    %v231 = vpop.f32.mrf.mxu0
    %v232 = vadd.f32 %v106, %v231
    %v233 = vpop.f32.mrf.mxu0
    %v234 = vadd.f32 %v102, %v233
    %v235 = vpop.f32.mrf.mxu0
    %v236 = vadd.f32 %v106, %v235
    %237 = vdwg.mxu0
    %v238 = vmax.f32 %v230, 0.0
    %v239 = vmax.f32 %v232, 0.0
    %v240 = vmax.f32 %v234, 0.0
    %v241 = vmax.f32 %v236, 0.0
    %v242 = vpack.c.bf16 %v240, %v238
    %v243 = vpack.c.bf16 %v241, %v239
    %v244 = vld [vmem:[#allocation7] sm:$0xff]
    %v245 = vld [vmem:[#allocation7 + $0x8] sm:$0xff]
    %v246 = vld [vmem:[#allocation7 + $0x10] sm:$0xff]
    %v247 = vld [vmem:[#allocation7 + $0x18] sm:$0xff]
    %v248 = vld [vmem:[#allocation7 + $0x20] sm:$0xff]
    %v249 = vld [vmem:[#allocation7 + $0x28] sm:$0xff]
    %v250 = vld [vmem:[#allocation7 + $0x30] sm:$0xff]
    %v251 = vld [vmem:[#allocation7 + $0x38] sm:$0xff]
    %v252 = vld [vmem:[#allocation7 + $0x40] sm:$0xff]
    %v253 = vld [vmem:[#allocation7 + $0x48] sm:$0xff]
    %v254 = vld [vmem:[#allocation7 + $0x50] sm:$0xff]
    %v255 = vld [vmem:[#allocation7 + $0x58] sm:$0xff]
    %v256 = vld [vmem:[#allocation7 + $0x60] sm:$0xff]
    %v257 = vld [vmem:[#allocation7 + $0x68] sm:$0xff]
    %v258 = vld [vmem:[#allocation7 + $0x70] sm:$0xff]
    %v259 = vld [vmem:[#allocation7 + $0x78] sm:$0xff]
    %v260 = vld [vmem:[#allocation7 + $0x80] sm:$0xff]
    %v261 = vld [vmem:[#allocation7 + $0x88] sm:$0xff]
    %v262 = vld [vmem:[#allocation7 + $0x90] sm:$0xff]
    %v263 = vld [vmem:[#allocation7 + $0x98] sm:$0xff]
    %v264 = vld [vmem:[#allocation7 + $0xa0] sm:$0xff]
    %v265 = vld [vmem:[#allocation7 + $0xa8] sm:$0xff]
    %v266 = vld [vmem:[#allocation7 + $0xb0] sm:$0xff]
    %v267 = vld [vmem:[#allocation7 + $0xb8] sm:$0xff]
    %v268 = vld [vmem:[#allocation7 + $0xc0] sm:$0xff]
    %v269 = vld [vmem:[#allocation7 + $0xc8] sm:$0xff]
    %v270 = vld [vmem:[#allocation7 + $0xd0] sm:$0xff]
    %v271 = vld [vmem:[#allocation7 + $0xd8] sm:$0xff]
    %v272 = vld [vmem:[#allocation7 + $0xe0] sm:$0xff]
    %v273 = vld [vmem:[#allocation7 + $0xe8] sm:$0xff]
    %v274 = vld [vmem:[#allocation7 + $0xf0] sm:$0xff]
    %v275 = vld [vmem:[#allocation7 + $0xf8] sm:$0xff]
    %v277 = vlaneseq
    %v278 = vshrl.u32 %v277, 7
    %v279 = vsub.s32 0, %v278
    %v280 = vrot.slane %v78, %v279
    %v281 = vlaneseq
    %v282 = vshrl.u32 %v281, 7
    %v283 = vsub.s32 1, %v282
    %v284 = vrot.slane %v78, %v283
    %v319 = vunpack.c.l.b16 %v244
    %v320 = vunpack.c.h.b16 %v244
    %v321 = vunpack.c.l.b16 %v245
    %v322 = vunpack.c.h.b16 %v245
    %v323 = vunpack.c.l.b16 %v246
    %v324 = vunpack.c.h.b16 %v246
    %v325 = vunpack.c.l.b16 %v247
    %v326 = vunpack.c.h.b16 %v247
    %v327 = vunpack.c.l.b16 %v248
    %v328 = vunpack.c.h.b16 %v248
    %v329 = vunpack.c.l.b16 %v249
    %v330 = vunpack.c.h.b16 %v249
    %v331 = vunpack.c.l.b16 %v250
    %v332 = vunpack.c.h.b16 %v250
    %v333 = vunpack.c.l.b16 %v251
    %v334 = vunpack.c.h.b16 %v251
    %v335 = vunpack.c.l.b16 %v252
    %v336 = vunpack.c.h.b16 %v252
    %v337 = vunpack.c.l.b16 %v253
    %v338 = vunpack.c.h.b16 %v253
    %v339 = vunpack.c.l.b16 %v254
    %v340 = vunpack.c.h.b16 %v254
    %v341 = vunpack.c.l.b16 %v255
    %v342 = vunpack.c.h.b16 %v255
    %v343 = vunpack.c.l.b16 %v256
    %v344 = vunpack.c.h.b16 %v256
    %v345 = vunpack.c.l.b16 %v257
    %v346 = vunpack.c.h.b16 %v257
    %v347 = vunpack.c.l.b16 %v258
    %v348 = vunpack.c.h.b16 %v258
    %v349 = vunpack.c.l.b16 %v259
    %v350 = vunpack.c.h.b16 %v259
    %v351 = vunpack.c.l.b16 %v260
    %v352 = vunpack.c.h.b16 %v260
    %v353 = vunpack.c.l.b16 %v261
    %v354 = vunpack.c.h.b16 %v261
    %v355 = vunpack.c.l.b16 %v262
    %v356 = vunpack.c.h.b16 %v262
    %v357 = vunpack.c.l.b16 %v263
    %v358 = vunpack.c.h.b16 %v263
    %v359 = vunpack.c.l.b16 %v264
    %v360 = vunpack.c.h.b16 %v264
    %v361 = vunpack.c.l.b16 %v265
    %v362 = vunpack.c.h.b16 %v265
    %v363 = vunpack.c.l.b16 %v266
    %v364 = vunpack.c.h.b16 %v266
    %v365 = vunpack.c.l.b16 %v267
    %v366 = vunpack.c.h.b16 %v267
    %v367 = vunpack.c.l.b16 %v268
    %v368 = vunpack.c.h.b16 %v268
    %v369 = vunpack.c.l.b16 %v269
    %v370 = vunpack.c.h.b16 %v269
    %v371 = vunpack.c.l.b16 %v270
    %v372 = vunpack.c.h.b16 %v270
    %v373 = vunpack.c.l.b16 %v271
    %v374 = vunpack.c.h.b16 %v271
    %v375 = vunpack.c.l.b16 %v272
    %v376 = vunpack.c.h.b16 %v272
    %v377 = vunpack.c.l.b16 %v273
    %v378 = vunpack.c.h.b16 %v273
    %v379 = vunpack.c.l.b16 %v274
    %v380 = vunpack.c.h.b16 %v274
    %v381 = vunpack.c.l.b16 %v275
    %v382 = vunpack.c.h.b16 %v275
    %v383 = vpack.c.b16 %v321, %v319
    %v384 = vpack.c.b16 %v322, %v320
    %v385 = vpack.c.b16 %v325, %v323
    %v386 = vpack.c.b16 %v326, %v324
    %v387 = vpack.c.b16 %v329, %v327
    %v388 = vpack.c.b16 %v330, %v328
    %v389 = vpack.c.b16 %v333, %v331
    %v390 = vpack.c.b16 %v334, %v332
    %v391 = vpack.c.b16 %v337, %v335
    %v392 = vpack.c.b16 %v338, %v336
    %v393 = vpack.c.b16 %v341, %v339
    %v394 = vpack.c.b16 %v342, %v340
    %v395 = vpack.c.b16 %v345, %v343
    %v396 = vpack.c.b16 %v346, %v344
    %v397 = vpack.c.b16 %v349, %v347
    %v398 = vpack.c.b16 %v350, %v348
    %v399 = vpack.c.b16 %v353, %v351
    %v400 = vpack.c.b16 %v354, %v352
    %v401 = vpack.c.b16 %v357, %v355
    %v402 = vpack.c.b16 %v358, %v356
    %v403 = vpack.c.b16 %v361, %v359
    %v404 = vpack.c.b16 %v362, %v360
    %v405 = vpack.c.b16 %v365, %v363
    %v406 = vpack.c.b16 %v366, %v364
    %v407 = vpack.c.b16 %v369, %v367
    %v408 = vpack.c.b16 %v370, %v368
    %v409 = vpack.c.b16 %v373, %v371
    %v410 = vpack.c.b16 %v374, %v372
    %v411 = vpack.c.b16 %v377, %v375
    %v412 = vpack.c.b16 %v378, %v376
    %v413 = vpack.c.b16 %v381, %v379
    %v414 = vpack.c.b16 %v382, %v380
    %447 = vmatprep.subr.bf16.mxu0 %v398
    %448 = vmatpush1.bf16.msra.mxu0 %v397
    %449 = vmatprep.subr.bf16.mxu0 %v396
    %450 = vmatpush1.bf16.msra.mxu0 %v395
    %451 = vmatprep.subr.bf16.mxu0 %v394
    %452 = vmatpush1.bf16.msra.mxu0 %v393
    %453 = vmatprep.subr.bf16.mxu0 %v392
    %454 = vmatpush1.bf16.msra.mxu0 %v391
    %455 = vmatprep.subr.bf16.mxu0 %v390
    %456 = vmatpush1.bf16.msra.mxu0 %v389
    %457 = vmatprep.subr.bf16.mxu0 %v388
    %458 = vmatpush1.bf16.msra.mxu0 %v387
    %459 = vmatprep.subr.bf16.mxu0 %v386
    %460 = vmatpush1.bf16.msra.mxu0 %v385
    %461 = vmatprep.subr.bf16.mxu0 %v384
    %462 = vmatpush1.bf16.msra.mxu0 %v383
    %463 = vmatprep.subr.bf16.mxu0 %v414
    %464 = vmatpush2.bf16.msra.mxu0 %v413
    %465 = vmatprep.subr.bf16.mxu0 %v412
    %466 = vmatpush2.bf16.msra.mxu0 %v411
    %467 = vmatprep.subr.bf16.mxu0 %v410
    %468 = vmatpush2.bf16.msra.mxu0 %v409
    %469 = vmatprep.subr.bf16.mxu0 %v408
    %470 = vmatpush2.bf16.msra.mxu0 %v407
    %471 = vmatprep.subr.bf16.mxu0 %v406
    %472 = vmatpush2.bf16.msra.mxu0 %v405
    %473 = vmatprep.subr.bf16.mxu0 %v404
    %474 = vmatpush2.bf16.msra.mxu0 %v403
    %475 = vmatprep.subr.bf16.mxu0 %v402
    %476 = vmatpush2.bf16.msra.mxu0 %v401
    %477 = vmatprep.subr.bf16.mxu0 %v400
    %478 = vmatpush2.bf16.msra.mxu0 %v399
    %479 = vmatprep.mubr.bf16.mxu0 %v243
    %480 = vmatmul.mubr.bf16.gmra.mxu0 %v242
    %v481 = vpop.f32.mrf.mxu0
    %v482 = vadd.f32 %v280, %v481
    %v483 = vpop.f32.mrf.mxu0
    %v484 = vadd.f32 %v284, %v483
    %v485 = vpop.f32.mrf.mxu0
    %v486 = vadd.f32 %v280, %v485
    %v487 = vpop.f32.mrf.mxu0
    %v488 = vadd.f32 %v284, %v487
    %489 = vdwg.mxu0
    %v490 = vmax.f32 %v482, 0.0
    %v491 = vmax.f32 %v484, 0.0
    %v492 = vmax.f32 %v486, 0.0
    %v493 = vmax.f32 %v488, 0.0
    %v494 = vpack.c.bf16 %v492, %v490
    %v495 = vpack.c.bf16 %v493, %v491
    %v496 = vld [vmem:[#allocation8] sm:$0xf]
    %v497 = vld [vmem:[#allocation8 + $0x4] sm:$0xf]
    %v498 = vld [vmem:[#allocation8 + $0x8] sm:$0xf]
    %v499 = vld [vmem:[#allocation8 + $0xc] sm:$0xf]
    %v500 = vld [vmem:[#allocation8 + $0x10] sm:$0xf]
    %v501 = vld [vmem:[#allocation8 + $0x14] sm:$0xf]
    %v502 = vld [vmem:[#allocation8 + $0x18] sm:$0xf]
    %v503 = vld [vmem:[#allocation8 + $0x1c] sm:$0xf]
    %v504 = vld [vmem:[#allocation8 + $0x20] sm:$0xf]
    %v505 = vld [vmem:[#allocation8 + $0x24] sm:$0xf]
    %v506 = vld [vmem:[#allocation8 + $0x28] sm:$0xf]
    %v507 = vld [vmem:[#allocation8 + $0x2c] sm:$0xf]
    %v508 = vld [vmem:[#allocation8 + $0x30] sm:$0xf]
    %v509 = vld [vmem:[#allocation8 + $0x34] sm:$0xf]
    %v510 = vld [vmem:[#allocation8 + $0x38] sm:$0xf]
    %v511 = vld [vmem:[#allocation8 + $0x3c] sm:$0xf]
    %v512 = vld [vmem:[#allocation8 + $0x40] sm:$0xf]
    %v513 = vld [vmem:[#allocation8 + $0x44] sm:$0xf]
    %v514 = vld [vmem:[#allocation8 + $0x48] sm:$0xf]
    %v515 = vld [vmem:[#allocation8 + $0x4c] sm:$0xf]
    %v516 = vld [vmem:[#allocation8 + $0x50] sm:$0xf]
    %v517 = vld [vmem:[#allocation8 + $0x54] sm:$0xf]
    %v518 = vld [vmem:[#allocation8 + $0x58] sm:$0xf]
    %v519 = vld [vmem:[#allocation8 + $0x5c] sm:$0xf]
    %v520 = vld [vmem:[#allocation8 + $0x60] sm:$0xf]
    %v521 = vld [vmem:[#allocation8 + $0x64] sm:$0xf]
    %v522 = vld [vmem:[#allocation8 + $0x68] sm:$0xf]
    %v523 = vld [vmem:[#allocation8 + $0x6c] sm:$0xf]
    %v524 = vld [vmem:[#allocation8 + $0x70] sm:$0xf]
    %v525 = vld [vmem:[#allocation8 + $0x74] sm:$0xf]
    %v526 = vld [vmem:[#allocation8 + $0x78] sm:$0xf]
    %v527 = vld [vmem:[#allocation8 + $0x7c] sm:$0xf]
    %v529 = vlaneseq
    %v530 = vshrl.u32 %v529, 7
    %v531 = vsub.s32 0, %v530
    %v532 = vrot.slane %v79, %v531
    %v566 = vunpack.c.l.b16 %v496
    %v567 = vunpack.c.l.b16 %v497
    %v568 = vunpack.c.l.b16 %v498
    %v569 = vunpack.c.l.b16 %v499
    %v570 = vunpack.c.l.b16 %v500
    %v571 = vunpack.c.l.b16 %v501
    %v572 = vunpack.c.l.b16 %v502
    %v573 = vunpack.c.l.b16 %v503
    %v574 = vunpack.c.l.b16 %v504
    %v575 = vunpack.c.l.b16 %v505
    %v576 = vunpack.c.l.b16 %v506
    %v577 = vunpack.c.l.b16 %v507
    %v578 = vunpack.c.l.b16 %v508
    %v579 = vunpack.c.l.b16 %v509
    %v580 = vunpack.c.l.b16 %v510
    %v581 = vunpack.c.l.b16 %v511
    %v582 = vunpack.c.l.b16 %v512
    %v583 = vunpack.c.l.b16 %v513
    %v584 = vunpack.c.l.b16 %v514
    %v585 = vunpack.c.l.b16 %v515
    %v586 = vunpack.c.l.b16 %v516
    %v587 = vunpack.c.l.b16 %v517
    %v588 = vunpack.c.l.b16 %v518
    %v589 = vunpack.c.l.b16 %v519
    %v590 = vunpack.c.l.b16 %v520
    %v591 = vunpack.c.l.b16 %v521
    %v592 = vunpack.c.l.b16 %v522
    %v593 = vunpack.c.l.b16 %v523
    %v594 = vunpack.c.l.b16 %v524
    %v595 = vunpack.c.l.b16 %v525
    %v596 = vunpack.c.l.b16 %v526
    %v597 = vunpack.c.l.b16 %v527
    %v598 = vpack.c.b16 %v567, %v566
    %v599 = vpack.c.b16 %v569, %v568
    %v600 = vpack.c.b16 %v571, %v570
    %v601 = vpack.c.b16 %v573, %v572
    %v602 = vpack.c.b16 %v575, %v574
    %v603 = vpack.c.b16 %v577, %v576
    %v604 = vpack.c.b16 %v579, %v578
    %v605 = vpack.c.b16 %v581, %v580
    %v606 = vpack.c.b16 %v583, %v582
    %v607 = vpack.c.b16 %v585, %v584
    %v608 = vpack.c.b16 %v587, %v586
    %v609 = vpack.c.b16 %v589, %v588
    %v610 = vpack.c.b16 %v591, %v590
    %v611 = vpack.c.b16 %v593, %v592
    %v612 = vpack.c.b16 %v595, %v594
    %v613 = vpack.c.b16 %v597, %v596
    %630 = vmatprep.subr.bf16.mxu0 0
    %631 = vmatpush1.bf16.msra.mxu0 %v605
    %632 = vmatprep.subr.bf16.mxu0 0
    %633 = vmatpush1.bf16.msra.mxu0 %v604
    %634 = vmatprep.subr.bf16.mxu0 0
    %635 = vmatpush1.bf16.msra.mxu0 %v603
    %636 = vmatprep.subr.bf16.mxu0 0
    %637 = vmatpush1.bf16.msra.mxu0 %v602
    %638 = vmatprep.subr.bf16.mxu0 0
    %639 = vmatpush1.bf16.msra.mxu0 %v601
    %640 = vmatprep.subr.bf16.mxu0 0
    %641 = vmatpush1.bf16.msra.mxu0 %v600
    %642 = vmatprep.subr.bf16.mxu0 0
    %643 = vmatpush1.bf16.msra.mxu0 %v599
    %644 = vmatprep.subr.bf16.mxu0 0
    %645 = vmatpush1.bf16.msra.mxu0 %v598
    %646 = vmatprep.subr.bf16.mxu0 0
    %647 = vmatpush2.bf16.msra.mxu0 %v613
    %648 = vmatprep.subr.bf16.mxu0 0
    %649 = vmatpush2.bf16.msra.mxu0 %v612
    %650 = vmatprep.subr.bf16.mxu0 0
    %651 = vmatpush2.bf16.msra.mxu0 %v611
    %652 = vmatprep.subr.bf16.mxu0 0
    %653 = vmatpush2.bf16.msra.mxu0 %v610
    %654 = vmatprep.subr.bf16.mxu0 0
    %655 = vmatpush2.bf16.msra.mxu0 %v609
    %656 = vmatprep.subr.bf16.mxu0 0
    %657 = vmatpush2.bf16.msra.mxu0 %v608
    %658 = vmatprep.subr.bf16.mxu0 0
    %659 = vmatpush2.bf16.msra.mxu0 %v607
    %660 = vmatprep.subr.bf16.mxu0 0
    %661 = vmatpush2.bf16.msra.mxu0 %v606
    %662 = vmatprep.mubr.bf16.mxu0 %v495
    %663 = vmatmul.mubr.bf16.gmra.mxu0 %v494
    %v664 = vpop.f32.mrf.mxu0
    %v665 = vadd.f32 %v532, %v664
    %v666 = vpop.f32.mrf.mxu0
    %v667 = vpop.f32.mrf.mxu0
    %v668 = vadd.f32 %v532, %v667
    %v669 = vpop.f32.mrf.mxu0
    %670 = vdwg.mxu0
    %v671 = vpack.c.bf16 %v668, %v665
    %v673 = vunpack.c.l.b16 %v671
    %v674 = vunpack.c.h.b16 %v671
    %v675 = vpack.c.b16 %v673, %v673
    %v676 = vpack.c.b16 %v674, %v674
    %679 = vst [vmem:[#allocation10] sm:$0xf] %v675
    %680 = vst [vmem:[#allocation10 + $0x4] sm:$0xf] %v676
    // Predicated region
    $region38: #{tpu_custom_call.1} parent=1 // pred_check
      _
    $region39: #{tpu_custom_call.1} parent=1 // pred_check_branch
      %682 = sbr.rel (0) target = $region41
    $region40: #{tpu_custom_call.1} parent=1 // pred_region
      %s684 = ssub.s32 128, 128
      %685 = vsyncadd [#allocation4], %s684
      %s686 = sshll.u32 [#allocation10], 4
      %s687 = int_to_ptr.vmem [resolvable:$true] %s686
      %692 = dma.vmem_to_hbm [thread:$0]  %s687, 128, %s5, [#allocation4], 64, 64, 4
    $region41: #{tpu_custom_call.1} parent=1 // pred_fallthru
      _
    // Predicated region
    $region42: #{tpu_custom_call.1} parent=1 // pred_check
      _
    $region43: #{tpu_custom_call.1} parent=1 // pred_check_branch
      %694 = sbr.rel (0) target = $region45
    $region44: #{tpu_custom_call.1} parent=1 // pred_region
      %695 = dma.done [#allocation4], 128
    $region45: #{tpu_custom_call.1} parent=1 // pred_fallthru
      _
    %696 = vsyncpa [#allocation3], 1
    %697 = vsyncpa [#allocation6], 1
    %698 = vsyncpa [#allocation9], 1
    %699 = vsyncpa [#allocation4], 1

</llo_original>
